<compile_context>
chip_gen: v7x
topology: tpu7x:2x2x1
jax: 0.10.0
libtpu: 0.0.40
codegen_flags: <defaults>
</compile_context>

<pallas_src>
import jax
import jax.numpy as jnp
import numpy as np
from jax.experimental import pallas as pl
from jax.experimental.pallas import tpu as pltpu


# ---------------------------------------------------------------------------
# Path 1 (preferred): aliased identity — zero data movement.
# ---------------------------------------------------------------------------
def _alias_identity_kernel(x_hbm_ref, o_hbm_ref):
    # Output HBM buffer *is* the input buffer (input_output_aliases={0: 0}),
    # both refs stay in HBM (pl.ANY), so there is nothing to do.
    del x_hbm_ref, o_hbm_ref


def _aliased_identity(x):
    return pl.pallas_call(
        _alias_identity_kernel,
        out_shape=jax.ShapeDtypeStruct(x.shape, x.dtype),
        in_specs=[pl.BlockSpec(memory_space=pl.ANY)],
        out_specs=pl.BlockSpec(memory_space=pl.ANY),
        input_output_aliases={0: 0},
    )(x)


# Donate the argument so XLA reuses the input buffer for the output:
# the "copy" disappears entirely.
identity_forward = jax.jit(_aliased_identity, donate_argnums=0)


# ---------------------------------------------------------------------------
# Path 2 (only if a distinct output buffer is required): one HBM->HBM DMA.
# ---------------------------------------------------------------------------
def _dma_copy_kernel(x_hbm_ref, o_hbm_ref, sem):
    cp = pltpu.make_async_copy(x_hbm_ref, o_hbm_ref, sem)
    cp.start()
    cp.wait()


@jax.jit
def identity_copy(x):
    return pl.pallas_call(
        _dma_copy_kernel,
        out_shape=jax.ShapeDtypeStruct(x.shape, x.dtype),
        in_specs=[pl.BlockSpec(memory_space=pl.ANY)],
        out_specs=pl.BlockSpec(memory_space=pl.ANY),
        scratch_shapes=[pltpu.SemaphoreType.DMA],
    )(x)


if __name__ == "__main__":
    key = jax.random.PRNGKey(0)
    x = jax.random.normal(key, (2, 4, 16, 16), dtype=jnp.float32)
    # Host copy taken *before* donation (x's device buffer is consumed below).
    x_host = np.asarray(x)

    # Preferred zero-copy path.
    y = identity_forward(x)
    jax.block_until_ready(y)
    assert y.shape == x_host.shape and y.dtype == x_host.dtype
    assert np.array_equal(np.asarray(y), x_host)

    # Distinct-output-buffer path (single HBM->HBM DMA).
    x2 = jax.random.normal(jax.random.PRNGKey(0), (2, 4, 16, 16), dtype=jnp.float32)
    y2 = identity_copy(x2)
    jax.block_until_ready(y2)
    assert y2.shape == x2.shape and y2.dtype == x2.dtype
    assert np.array_equal(np.asarray(y2), np.asarray(x2))

    print("KERNEL_OK")
</pallas_src>

<mosaic_0001>
module attributes {stable_mosaic.version = 11 : i64} {
  func.func @_alias_identity_kernel(%arg0: memref<2x4x16x16xf32, #tpu.memory_space<any>>, %arg1: memref<2x4x16x16xf32, #tpu.memory_space<any>>) attributes {dimension_semantics = [], scalar_prefetch = 0 : i64, scratch_operands = 0 : i64, tpu.core_type = #tpu.core_type<tc>} {
    return
  }
}

</mosaic_0001>

<llo_original>
// kernel: _aliased_identity.1
$region0: #{_aliased_identity.1}
  #allocation0 [shape = 'u32[]', space=smem, size = 0x4, offset = 0x4, fixed_abs, tag = 'smem constant byte address 0x4 - core index']
  #allocation1 [shape = 'u32[144,128]{1,0:T(1,128)}', space=vmem, size = 0x12000, scoped, tag = 'internal scratch']
  %s0 = inlined_call_operand.hbm [shape: f32[2,4,16,16], index: 0, kind: input, shape index: {}, may-alias: {0,1}]
  %s1 = inlined_call_operand.hbm [shape: f32[2,4,16,16], index: 1, kind: output, shape index: {}, may-alias: {0,1}]
  %s2 = sld [smem:[#allocation0]]
  $region2: #{_aliased_identity.1} parent=0
    _
  %s4 = ssub.s32 1, %s2
  %s5 = scalar_select 0, %s4, %s2

</llo_original>
